<compile_context>
chip_gen: v7x
topology: tpu7x:2x2x1
jax: 0.10.0
libtpu: 0.0.40
codegen_flags: <defaults>
</compile_context>

<pallas_src>
import functools

import jax
import jax.numpy as jnp
from jax.experimental import pallas as pl
from jax.experimental.pallas import tpu as pltpu


_TARGET_BLOCK_BYTES = 3 * 1024 * 1024  # input bytes per block; keeps f32 live set
                                       # (~2x in + ~6x f32) under v7x's 64 MiB VMEM.


def _tv_kernel(x_ref, mask_ref, out_ref, *, hw, width, n_total, tb, ragged, use_roll):
    """One block of `tb` flattened planes.

    x_ref:    (tb, hw) block of the (n, H*W) input (last block may be clipped).
    mask_ref: (2, hw) resident f32 masks; [0]=vertical-diff valid, [1]=horizontal.
    out_ref:  (1, 2, 8, 128) per-block partials; [0,0]=h_tv part, [0,1]=w_tv part.
    """
    x = x_ref[...].astype(jnp.float32)                       # (tb, hw)

    if ragged:
        # Zero out planes past the end of the real array (clipped DMA leaves
        # garbage rows in the buffer for the last block).
        rem = n_total - pl.program_id(0) * tb
        row = jax.lax.broadcasted_iota(jnp.int32, (tb, hw), 0)
        x = jnp.where(row < rem, x, 0.0)

    mask = mask_ref[...]                                     # (2, hw) f32, resident

    if use_roll:
        # roll(x, hw - s)[p] == x[(p + s) % hw]; wrapped tail is masked to 0.
        dh = (pltpu.roll(x, hw - width, axis=1) - x) * mask[0:1, :]
        dw = (pltpu.roll(x, hw - 1, axis=1) - x) * mask[1:2, :]
    else:
        # Fallback for lane dims not a multiple of 128 (roll alignment).
        dh = x[:, width:] - x[:, :-width]                    # all positions valid
        dw = (x[:, 1:] - x[:, :-1]) * mask[1:2, : hw - 1]    # mask row-crossing diffs

    h_sum = jnp.sum(dh * dh, keepdims=True)                  # (1, 1)
    w_sum = jnp.sum(dw * dw, keepdims=True)                  # (1, 1)

    # Dense (8,128) lane-friendly stores; wrapper reads element [.., 0, 0].
    out_ref[0, 0] = jnp.broadcast_to(h_sum, (8, 128))
    out_ref[0, 1] = jnp.broadcast_to(w_sum, (8, 128))


def tv_loss(x, tv_loss_weight=1.0):
    """Matches TVLoss.forward for NCHW input x (any float dtype)."""
    b, c, h, w = x.shape
    n = b * c
    hw = h * w
    x_flat = x.reshape(n, hw)

    itemsize = jnp.dtype(x.dtype).itemsize
    row_bytes = hw * itemsize

    # Planes per block: ~_TARGET_BLOCK_BYTES of input, multiple of 8 sublanes,
    # never larger than n (so only the standard "clipped last block" case occurs).
    if n < 8:
        tb = n                                   # block dim == full array dim: legal
    else:
        tb = max(1, _TARGET_BLOCK_BYTES // row_bytes)
        tb = max(8, (tb // 8) * 8)
        tb = min(tb, (n // 8) * 8)
        # v7x megacore: if it would be a single block but n allows it, split so the
        # "parallel" grid axis can be sharded across both TensorCores.
        if tb >= n and n >= 16:
            tb = ((n // 2 + 7) // 8) * 8
    num_blocks = pl.cdiv(n, tb)
    ragged = (n % tb) != 0                       # handled in-kernel, no jnp.pad copy
    use_roll = (hw % 128 == 0)                   # lane-aligned rotates; else slices

    # Resident 0/1 masks (DMA'd once thanks to the constant index_map):
    #   row 0: vertical diff valid  (p + W stays inside the plane)
    #   row 1: horizontal diff valid (p is not the last column of its row)
    p = jnp.arange(hw, dtype=jnp.int32)
    mask = jnp.stack(
        [(p < hw - w).astype(jnp.float32),
         ((p % w) != (w - 1)).astype(jnp.float32)],
        axis=0)                                  # (2, hw)

    # VMEM budget: double-buffered input block + ~6x f32 block of intermediates
    # (upcast, shifted copy, diffs/squares) + margin.  Fits v7x's 64 MiB for the
    # ~3 MiB target block; v5e/v6e have 128 MiB of headroom.
    in_block = tb * row_bytes
    f32_block = tb * hw * 4
    vmem_limit = 2 * in_block + 6 * f32_block + (8 << 20)
    vmem_limit = int(min(max(vmem_limit, 32 << 20), 100 << 20))
    # TODO(synk): planes larger than a few MiB (tb clamped to 8) would need an
    # extra H*W-axis tiling pass (with a W-element halo) to stay inside VMEM.

    kernel = functools.partial(
        _tv_kernel, hw=hw, width=w, n_total=n, tb=tb, ragged=ragged, use_roll=use_roll)

    parts = pl.pallas_call(
        kernel,
        out_shape=jax.ShapeDtypeStruct((num_blocks, 2, 8, 128), jnp.float32),
        grid_spec=pltpu.PrefetchScalarGridSpec(
            num_scalar_prefetch=0,
            grid=(num_blocks,),
            in_specs=[
                pl.BlockSpec((tb, hw), lambda i: (i, 0)),
                pl.BlockSpec((2, hw), lambda i: (0, 0)),    # constant -> stays resident
            ],
            out_specs=pl.BlockSpec((1, 2, 8, 128), lambda i: (i, 0, 0, 0)),
        ),
        compiler_params=pltpu.CompilerParams(
            dimension_semantics=("parallel",),              # disjoint per-block outputs
            vmem_limit_bytes=vmem_limit,
        ),
    )(x_flat, mask)

    h_tv = jnp.sum(parts[:, 0, 0, 0])
    w_tv = jnp.sum(parts[:, 1, 0, 0])
    count_h = c * (h - 1) * w
    count_w = c * h * (w - 1)
    # NOTE: h==1 or w==1 divides by zero, matching the PyTorch module's behavior.
    return tv_loss_weight * 2.0 * (h_tv / count_h + w_tv / count_w) / b


def tv_loss_ref(x, tv_loss_weight=1.0):
    # Pure-JAX reference (mirrors the PyTorch module exactly).
    b, c, h, w = x.shape
    xf = x.astype(jnp.float32)
    h_tv = jnp.sum((xf[:, :, 1:, :] - xf[:, :, :-1, :]) ** 2)
    w_tv = jnp.sum((xf[:, :, :, 1:] - xf[:, :, :, :-1]) ** 2)
    count_h = c * (h - 1) * w
    count_w = c * h * (w - 1)
    return tv_loss_weight * 2.0 * (h_tv / count_h + w_tv / count_w) / b


if __name__ == "__main__":
    # Main test: the module's expected NCHW usage. hw = 256 (128-aligned) -> roll path,
    # n = 8 divides the block exactly -> non-ragged path.
    key = jax.random.PRNGKey(0)
    x = jax.random.normal(key, (2, 4, 16, 16), dtype=jnp.float32)
    out = jax.block_until_ready(tv_loss(x, tv_loss_weight=1.0))
    ref = tv_loss_ref(x, tv_loss_weight=1.0)
    assert jnp.allclose(out, ref, rtol=1e-5, atol=1e-5), (out, ref)

    # Second shape: n = 9 planes -> ragged last block (in-kernel row mask, no pad),
    # hw = 480 not a multiple of 128 -> sliced-diff fallback with the resident mask.
    x2 = jax.random.normal(jax.random.PRNGKey(1), (3, 3, 24, 20), dtype=jnp.float32)
    out2 = jax.block_until_ready(tv_loss(x2))
    ref2 = tv_loss_ref(x2)
    assert jnp.allclose(out2, ref2, rtol=1e-5, atol=1e-5), (out2, ref2)

    print("KERNEL_OK")
</pallas_src>

<mosaic_0001>
module attributes {stable_mosaic.version = 11 : i64} {
  func.func @_tv_kernel(%arg0: i32, %arg1: memref<8x256xf32, #tpu.memory_space<vmem>>, %arg2: memref<2x256xf32, #tpu.memory_space<vmem>>, %arg3: memref<1x2x8x128xf32, #tpu.memory_space<vmem>>) attributes {dimension_semantics = [#tpu.dimension_semantics<parallel>], iteration_bounds = array<i64: 1>, scalar_prefetch = 0 : i64, scratch_operands = 0 : i64, tpu.core_type = #tpu.core_type<tc>, window_params = [{transform_indices = @transform_0, window_bounds = array<i64: 8, 256>}, {pipeline_mode = #tpu.pipeline_mode<synchronous>, transform_indices = @transform_1, window_bounds = array<i64: 2, 256>}, {transform_indices = @transform_2, window_bounds = array<i64: 1, 2, 8, 128>}]} {
    %c0 = arith.constant 0 : index
    %c0_0 = arith.constant 0 : index
    %0 = vector.load %arg1[%c0, %c0_0] : memref<8x256xf32, #tpu.memory_space<vmem>>, vector<8x256xf32>
    %c0_1 = arith.constant 0 : index
    %c0_2 = arith.constant 0 : index
    %1 = vector.load %arg2[%c0_1, %c0_2] : memref<2x256xf32, #tpu.memory_space<vmem>>, vector<2x256xf32>
    %c240_i32 = arith.constant 240 : i32
    %2 = tpu.dynamic_rotate %0 by %c240_i32 dim 1 : vector<8x256xf32>, i32 -> vector<8x256xf32>
    %3 = arith.subf %2, %0 : vector<8x256xf32>
    %4 = vector.extract_strided_slice %1 {offsets = [0, 0], sizes = [1, 256], strides = [1, 1]} : vector<2x256xf32> to vector<1x256xf32>
    %5 = vector.broadcast %4 : vector<1x256xf32> to vector<8x256xf32>
    %6 = arith.mulf %3, %5 : vector<8x256xf32>
    %c255_i32 = arith.constant 255 : i32
    %7 = tpu.dynamic_rotate %0 by %c255_i32 dim 1 : vector<8x256xf32>, i32 -> vector<8x256xf32>
    %8 = arith.subf %7, %0 : vector<8x256xf32>
    %9 = vector.extract_strided_slice %1 {offsets = [1, 0], sizes = [1, 256], strides = [1, 1]} : vector<2x256xf32> to vector<1x256xf32>
    %10 = vector.broadcast %9 : vector<1x256xf32> to vector<8x256xf32>
    %11 = arith.mulf %8, %10 : vector<8x256xf32>
    %12 = arith.mulf %6, %6 : vector<8x256xf32>
    %13 = vector.shape_cast %12 : vector<8x256xf32> to vector<1x8x256xf32>
    %cst = arith.constant dense<0.000000e+00> : vector<1xf32>
    %14 = vector.multi_reduction <add>, %13, %cst [1, 2] : vector<1x8x256xf32> to vector<1xf32>
    %15 = vector.shape_cast %14 : vector<1xf32> to vector<1x1x1xf32>
    %16 = vector.extract %15[0, 0, 0] : f32 from vector<1x1x1xf32>
    %17 = vector.broadcast %16 : f32 to vector<1x1xf32>
    %18 = arith.mulf %11, %11 : vector<8x256xf32>
    %19 = vector.shape_cast %18 : vector<8x256xf32> to vector<1x8x256xf32>
    %cst_3 = arith.constant dense<0.000000e+00> : vector<1xf32>
    %20 = vector.multi_reduction <add>, %19, %cst_3 [1, 2] : vector<1x8x256xf32> to vector<1xf32>
    %21 = vector.shape_cast %20 : vector<1xf32> to vector<1x1x1xf32>
    %22 = vector.extract %21[0, 0, 0] : f32 from vector<1x1x1xf32>
    %23 = vector.broadcast %22 : f32 to vector<1x1xf32>
    %24 = vector.shape_cast %17 : vector<1x1xf32> to vector<1x1xf32>
    %25 = vector.broadcast %24 : vector<1x1xf32> to vector<8x128xf32>
    %c0_4 = arith.constant 0 : index
    %c0_5 = arith.constant 0 : index
    %c0_6 = arith.constant 0 : index
    %c0_7 = arith.constant 0 : index
    %26 = vector.load %arg3[%c0_4, %c0_5, %c0_6, %c0_7] : memref<1x2x8x128xf32, #tpu.memory_space<vmem>>, vector<1x1x8x128xf32>
    %27 = vector.shape_cast %26 : vector<1x1x8x128xf32> to vector<8x128xf32>
    %28 = vector.shape_cast %25 : vector<8x128xf32> to vector<1x1x8x128xf32>
    tpu.vector_store %arg3[%c0_4, %c0_5, %c0_6, %c0_7], %28 {strides = array<i32>} : memref<1x2x8x128xf32, #tpu.memory_space<vmem>>, vector<1x1x8x128xf32>,
    %29 = vector.shape_cast %23 : vector<1x1xf32> to vector<1x1xf32>
    %30 = vector.broadcast %29 : vector<1x1xf32> to vector<8x128xf32>
    %c0_8 = arith.constant 0 : index
    %c1 = arith.constant 1 : index
    %c0_9 = arith.constant 0 : index
    %c0_10 = arith.constant 0 : index
    %31 = vector.load %arg3[%c0_8, %c1, %c0_9, %c0_10] : memref<1x2x8x128xf32, #tpu.memory_space<vmem>>, vector<1x1x8x128xf32>
    %32 = vector.shape_cast %31 : vector<1x1x8x128xf32> to vector<8x128xf32>
    %33 = vector.shape_cast %30 : vector<8x128xf32> to vector<1x1x8x128xf32>
    tpu.vector_store %arg3[%c0_8, %c1, %c0_9, %c0_10], %33 {strides = array<i32>} : memref<1x2x8x128xf32, #tpu.memory_space<vmem>>, vector<1x1x8x128xf32>,
    return
  }
  func.func @transform_0(%arg0: i32) -> (i32, i32) {
    %c0_i32 = arith.constant 0 : i32
    %c0_i32_0 = arith.constant 0 : i32
    return %arg0, %c0_i32 : i32, i32
  }
  func.func @transform_1(%arg0: i32) -> (i32, i32) {
    %c0_i32 = arith.constant 0 : i32
    %c0_i32_0 = arith.constant 0 : i32
    %c0_i32_1 = arith.constant 0 : i32
    return %c0_i32, %c0_i32_0 : i32, i32
  }
  func.func @transform_2(%arg0: i32) -> (i32, i32, i32, i32) {
    %c0_i32 = arith.constant 0 : i32
    %c0_i32_0 = arith.constant 0 : i32
    %c0_i32_1 = arith.constant 0 : i32
    %c0_i32_2 = arith.constant 0 : i32
    return %arg0, %c0_i32, %c0_i32_0, %c0_i32_1 : i32, i32, i32, i32
  }
}

</mosaic_0001>

<llo_original>
// kernel: tpu_custom_call.1
$region0: #{tpu_custom_call.1}
  #allocation0 [shape = 'u32[]', space=smem, size = 0x4, offset = 0x4, fixed_abs, tag = 'smem constant byte address 0x4 - core index']
  #allocation1 [shape = 'u32[144,128]{1,0:T(1,128)}', space=vmem, size = 0x12000, scoped, tag = 'internal scratch']
  %s0 = inlined_call_operand.hbm [shape: f32[8,256], index: 0, kind: input, shape index: {}]
  %s1 = inlined_call_operand.hbm [shape: f32[2,256], index: 1, kind: input, shape index: {}]
  %s2 = inlined_call_operand.hbm [shape: f32[1,2,8,128], index: 2, kind: output, shape index: {}]
  %s3 = sld [smem:[#allocation0]]
  $region26: #{tpu_custom_call.1} parent=0
    _
  %s5 = ssub.s32 1, %s3
  %s6 = scalar_select 0, %s5, %s3
  $region1: #{tpu_custom_call.1} parent=0
    #allocation2 [shape = 'u8[8192]{0}', space=vmem, size = 0x2000, scoped, tag = 'input window, operand 0, single buffered']
    #allocation3 [shape = 's32[1]{0}', space=sflag, size = 0x4, scoped, tag = 'scoped memory for tpu_custom_call.1']
    #allocation4 [shape = 's32[1]{0}', space=sflag, size = 0x4, scoped, tag = 'scoped memory for tpu_custom_call.1']
    #allocation5 [shape = 'u8[2048]{0}', space=vmem, size = 0x800, scoped, tag = 'input window, operand 1, single buffered']
    #allocation6 [shape = 's32[1]{0}', space=sflag, size = 0x4, scoped, tag = 'scoped memory for tpu_custom_call.1']
    #allocation7 [shape = 'u8[8192]{0}', space=vmem, size = 0x2000, scoped, tag = 'output window, operand 0, single buffered']
    %7 = vsyncpa [#allocation3], 0
    %8 = vsyncpa [#allocation6], 0
    %9 = vsyncpa [#allocation4], 0
    // Predicated region
    $region2: #{tpu_custom_call.1} parent=1 // pred_check
      _
    $region3: #{tpu_custom_call.1} parent=1 // pred_check_branch
      %11 = sbr.rel (0) target = $region5
    $region4: #{tpu_custom_call.1} parent=1 // pred_region
      %s13 = ssub.s32 256, 256
      %14 = vsyncadd [#allocation3], %s13
      %s16 = sshll.u32 [#allocation2], 4
      %s17 = int_to_ptr.vmem [resolvable:$true] %s16
      %19 = dma.hbm_to_vmem [thread:$0]  %s0, 256, %s17, [#allocation3]
    $region5: #{tpu_custom_call.1} parent=1 // pred_fallthru
      _
    // Predicated region
    $region6: #{tpu_custom_call.1} parent=1 // pred_check
      _
    $region7: #{tpu_custom_call.1} parent=1 // pred_check_branch
      %21 = sbr.rel (0) target = $region9
    $region8: #{tpu_custom_call.1} parent=1 // pred_region
      %s23 = ssub.s32 64, 64
      %24 = vsyncadd [#allocation6], %s23
      %s26 = sshll.u32 [#allocation5], 4
      %s27 = int_to_ptr.vmem [resolvable:$true] %s26
      %29 = dma.hbm_to_vmem [thread:$0]  %s1, 64, %s27, [#allocation6]
    $region9: #{tpu_custom_call.1} parent=1 // pred_fallthru
      _
    // Predicated region
    $region10: #{tpu_custom_call.1} parent=1 // pred_check
      _
    $region11: #{tpu_custom_call.1} parent=1 // pred_check_branch
      %31 = sbr.rel (0) target = $region13
    $region12: #{tpu_custom_call.1} parent=1 // pred_region
      %32 = dma.done [#allocation3], 256
    $region13: #{tpu_custom_call.1} parent=1 // pred_fallthru
      _
    // Predicated region
    $region14: #{tpu_custom_call.1} parent=1 // pred_check
      _
    $region15: #{tpu_custom_call.1} parent=1 // pred_check_branch
      %34 = sbr.rel (0) target = $region17
    $region16: #{tpu_custom_call.1} parent=1 // pred_region
      %35 = dma.done [#allocation6], 64
    $region17: #{tpu_custom_call.1} parent=1 // pred_fallthru
      _
    %v36 = vld [vmem:[#allocation2] sm:$0xff]
    %v37 = vld [vmem:[#allocation2 + $0x8] sm:$0xff]
    %v38 = vld [vmem:[#allocation5] sm:$0xf]
    %39 = vrot.lane.b32.xlu0 %v36, 112
    %v40 = vpop.permute.xlu0 %39
    %41 = vrot.lane.b32.xlu0 %v37, 112
    %v42 = vpop.permute.xlu0 %41
    %v43 = vlaneseq
    %v44 = vand.u32 %v43, 127
    %vm45 = vcmp.lt.s32.totalorder %v44, 112
    %v46 = vsel %vm45, %v40, %v42
    %v47 = vsel %vm45, %v42, %v40
    %v48 = vsub.f32 %v46, %v36
    %v49 = vsub.f32 %v47, %v37
    %v51 = vlaneseq
    %v52 = vshrl.u32 %v51, 7
    %v53 = vsub.s32 0, %v52
    %v54 = vrot.slane %v38, %v53
    %v55 = vlaneseq
    %v56 = vshrl.u32 %v55, 7
    %v57 = vsub.s32 2, %v56
    %v58 = vrot.slane %v38, %v57
    %v61 = vlaneseq
    %v62 = vshrl.u32 %v61, 7
    %v63 = vsub.s32 0, %v62
    %v64 = vrot.slane %v54, %v63
    %v65 = vlaneseq
    %v66 = vshrl.u32 %v65, 7
    %v67 = vsub.s32 0, %v66
    %v68 = vrot.slane %v58, %v67
    %v69 = vmul.f32 %v48, %v64
    %v70 = vmul.f32 %v49, %v68
    %71 = vrot.lane.b32.xlu0 %v36, 127
    %v72 = vpop.permute.xlu0 %71
    %73 = vrot.lane.b32.xlu0 %v37, 127
    %v74 = vpop.permute.xlu0 %73
    %vm75 = vcmp.lt.s32.totalorder %v44, 127
    %v76 = vsel %vm75, %v72, %v74
    %v77 = vsel %vm75, %v74, %v72
    %v78 = vsub.f32 %v76, %v36
    %v79 = vsub.f32 %v77, %v37
    %v80 = vlaneseq
    %v81 = vshrl.u32 %v80, 7
    %v82 = vsub.s32 1, %v81
    %v83 = vrot.slane %v38, %v82
    %v84 = vlaneseq
    %v85 = vshrl.u32 %v84, 7
    %v86 = vsub.s32 3, %v85
    %v87 = vrot.slane %v38, %v86
    %v90 = vlaneseq
    %v91 = vshrl.u32 %v90, 7
    %v92 = vsub.s32 1, %v91
    %v93 = vrot.slane %v83, %v92
    %v94 = vlaneseq
    %v95 = vshrl.u32 %v94, 7
    %v96 = vsub.s32 1, %v95
    %v97 = vrot.slane %v87, %v96
    %v98 = vmul.f32 %v78, %v93
    %v99 = vmul.f32 %v79, %v97
    %v100 = vmul.f32 %v69, %v69
    %v101 = vmul.f32 %v70, %v70
    %v102 = vadd.f32 %v100, %v101
    %103 = vadd.xlane.f32.xlu0 %v102
    %v104 = vpop.xlane.xlu0 %103
    %v105 = vrot.slane %v104, 4
    %v106 = vadd.f32 %v104, %v105
    %v107 = vrot.slane %v106, 2
    %v108 = vadd.f32 %v106, %v107
    %v109 = vrot.slane %v108, 1
    %v110 = vadd.f32 %v108, %v109
    %s111 = vtos %v110
    %v112 = vmul.f32 %v98, %v98
    %v113 = vmul.f32 %v99, %v99
    %v114 = vadd.f32 %v112, %v113
    %115 = vadd.xlane.f32.xlu0 %v114
    %v116 = vpop.xlane.xlu0 %115
    %v117 = vrot.slane %v116, 4
    %v118 = vadd.f32 %v116, %v117
    %v119 = vrot.slane %v118, 2
    %v120 = vadd.f32 %v118, %v119
    %v121 = vrot.slane %v120, 1
    %v122 = vadd.f32 %v120, %v121
    %s123 = vtos %v122
    %v124 = vstv %s111
    %125 = vst [vmem:[#allocation7] sm:$0xff] %v124
    %v126 = vstv %s123
    %s127 = scalar_lea.vmem [#allocation7], 8
    %128 = vst [vmem:[%s127] sm:$0xff] %v126
    // Predicated region
    $region18: #{tpu_custom_call.1} parent=1 // pred_check
      _
    $region19: #{tpu_custom_call.1} parent=1 // pred_check_branch
      %130 = sbr.rel (0) target = $region21
    $region20: #{tpu_custom_call.1} parent=1 // pred_region
      %s132 = ssub.s32 256, 256
      %133 = vsyncadd [#allocation4], %s132
      %s134 = sshll.u32 [#allocation7], 4
      %s135 = int_to_ptr.vmem [resolvable:$true] %s134
      %140 = dma.vmem_to_hbm [thread:$0]  %s135, 256, %s2, [#allocation4], 128, 128, 8
    $region21: #{tpu_custom_call.1} parent=1 // pred_fallthru
      _
    // Predicated region
    $region22: #{tpu_custom_call.1} parent=1 // pred_check
      _
    $region23: #{tpu_custom_call.1} parent=1 // pred_check_branch
      %142 = sbr.rel (0) target = $region25
    $region24: #{tpu_custom_call.1} parent=1 // pred_region
      %143 = dma.done [#allocation4], 256
    $region25: #{tpu_custom_call.1} parent=1 // pred_fallthru
      _
    %144 = vsyncpa [#allocation3], 1
    %145 = vsyncpa [#allocation6], 1
    %146 = vsyncpa [#allocation4], 1

</llo_original>
